<compile_context>
chip_gen: v7x
topology: tpu7x:2x2x1
jax: 0.10.0
libtpu: 0.0.40
codegen_flags: <defaults>
</compile_context>

<pallas_src>
import functools

import jax
import jax.numpy as jnp
from jax.experimental import pallas as pl
from jax.experimental.pallas import tpu as pltpu


def _round_up(x, m):
    return ((x + m - 1) // m) * m


# -----------------------------------------------------------------------------
# Pallas kernel: out = heads( leaky_relu( x @ W1 + b1 ) @ W2 + b2 )
# Column layout (baked into W2/b2 in __init__):
#   [0, A)         conf scores              -> sigmoid
#   [A, 5A)        per-anchor tx,ty,tw,th   -> sigmoid - 0.5 on tx,ty ; raw on tw,th
#   [5A, 5A+C)     class scores             -> raw
#   [5A+C, 128*k)  zero padding             -> raw (sliced off by the wrapper)
# -----------------------------------------------------------------------------
def _pred_mlp_kernel(x_ref, w1_ref, b1_ref, w2_ref, b2_ref, out_ref, *, num_anchors):
    A = num_anchors
    x = x_ref[...]                                            # (TN, Cin) bf16
    h = jnp.dot(x, w1_ref[...], preferred_element_type=jnp.float32) + b1_ref[...]
    # TODO(synk): nn.Dropout(p=0.3) is identity in eval mode; training-mode
    # stochastic dropout is not reproduced here.
    h = jnp.where(h > 0, h, 0.01 * h)                         # LeakyReLU (slope 0.01), f32
    o = jnp.dot(h.astype(jnp.bfloat16), w2_ref[...],
                preferred_element_type=jnp.float32) + b2_ref[...]

    dout = o.shape[-1]
    col = jax.lax.broadcasted_iota(jnp.int32, (1, dout), 1)
    is_conf = col < A
    is_off_xy = (col >= A) & (col < 5 * A) & (((col - A) % 4) < 2)
    sig_mask = is_conf | is_off_xy
    shift = jnp.where(is_off_xy, 0.5, 0.0)
    # sigmoid = 1 / (1 + exp(-o)): exp goes to the EUP, approximate reciprocal avoids a
    # VALU divide (small free win on v7x; noise on v5e/v6e where the kernel is DMA-bound).
    sig = pl.reciprocal(1.0 + jnp.exp(-o), approx=True)
    o = jnp.where(sig_mask, sig - shift, o)
    out_ref[...] = o.astype(out_ref.dtype)


def _run_pred_mlp(x_rows, w1, b1, w2, b2, num_anchors, *,
                  tile_n=4096, out_dtype=jnp.bfloat16):
    """x_rows: (N, Cin) bf16 -> (N, Dout_pad) out_dtype (Dout_pad is a multiple of 128)."""
    n, cin = x_rows.shape
    hidden = w1.shape[1]
    dout_pad = w2.shape[1]

    # Cap the tile so (a) tiny inputs don't get an oversized block and (b) the grid keeps
    # >= 2 steps, letting the "parallel" row axis be sharded across v7x's two TensorCores.
    # Multiples of 16 keep bf16 blocks on native (16, 128) sublane tiles.
    tile_n = min(tile_n, max(16, _round_up(pl.cdiv(n, 2), 16)))
    grid = (pl.cdiv(n, tile_n),)   # ragged tail handled as a partial last block (no pad copy)

    kernel = functools.partial(_pred_mlp_kernel, num_anchors=num_anchors)
    out = pl.pallas_call(
        kernel,
        out_shape=jax.ShapeDtypeStruct((n, dout_pad), out_dtype),
        grid_spec=pltpu.PrefetchScalarGridSpec(
            num_scalar_prefetch=0,
            grid=grid,
            in_specs=[
                pl.BlockSpec((tile_n, cin), lambda i: (i, 0)),       # x rows tile (bf16)
                pl.BlockSpec((cin, hidden), lambda i: (0, 0)),       # W1 (grid-invariant)
                pl.BlockSpec((1, hidden), lambda i: (0, 0)),         # b1
                pl.BlockSpec((hidden, dout_pad), lambda i: (0, 0)),  # W2 (grid-invariant)
                pl.BlockSpec((1, dout_pad), lambda i: (0, 0)),       # b2
            ],
            out_specs=pl.BlockSpec((tile_n, dout_pad), lambda i: (i, 0)),
        ),
        compiler_params=pltpu.CompilerParams(
            dimension_semantics=("parallel",),
            vmem_limit_bytes=32 * 1024 * 1024),
    )(x_rows, w1, b1, w2, b2)
    return out


# -----------------------------------------------------------------------------
# Wrapper replicating PredictionNetwork.forward semantics
# -----------------------------------------------------------------------------
class PredictionNetworkPallas:
    def __init__(self, in_dim, hidden_dim=128, num_anchors=9, num_classes=20,
                 drop_ratio=0.3, out_dtype=jnp.bfloat16, key=jax.random.PRNGKey(0)):
        assert num_classes != 0 and num_anchors != 0
        self.num_classes = num_classes
        self.num_anchors = num_anchors
        self.drop_ratio = drop_ratio
        self.out_dtype = out_dtype
        A, C = num_anchors, num_classes
        dout = 5 * A + C
        dout_pad = ((dout + 127) // 128) * 128        # lane-dense output width
        self.dout = dout

        k1, k2, k3, k4 = jax.random.split(key, 4)
        # Deterministic Conv2d-style init (kaiming-uniform-ish bounds); 1x1 convs are
        # stored directly as (Cin, Cout) matmul weights, generated in the original
        # PyTorch channel order...
        bound1 = 1.0 / (in_dim ** 0.5)
        bound2 = 1.0 / (hidden_dim ** 0.5)
        w1 = jax.random.uniform(k1, (in_dim, hidden_dim), jnp.float32, -bound1, bound1)
        b1 = jax.random.uniform(k2, (1, hidden_dim), jnp.float32, -bound1, bound1)
        w2 = jax.random.uniform(k3, (hidden_dim, dout), jnp.float32, -bound2, bound2)
        b2 = jax.random.uniform(k4, (1, dout), jnp.float32, -bound2, bound2)

        # ...then the channel permutation is baked into W2/b2 columns so the kernel
        # directly emits [conf | per-anchor (tx,ty,tw,th) | class | zero-pad].
        # PyTorch channel map: 5a = conf_a, 5a+1..5a+4 = tx,ty,tw,th of anchor a,
        # 5A+c = class c.
        perm = ([5 * a for a in range(A)]
                + [5 * a + 1 + d for a in range(A) for d in range(4)]
                + [5 * A + c for c in range(C)])
        perm = jnp.array(perm, jnp.int32)
        w2p = jnp.zeros((hidden_dim, dout_pad), jnp.float32).at[:, :dout].set(w2[:, perm])
        b2p = jnp.zeros((1, dout_pad), jnp.float32).at[:, :dout].set(b2[:, perm])

        # f32 masters (pure-JAX reference) + bf16 copies for the MXU operands.
        self.w1_f32, self.w2_f32 = w1, w2p
        self.b1, self.b2 = b1, b2p
        self.w1 = w1.astype(jnp.bfloat16)
        self.w2 = w2p.astype(jnp.bfloat16)

    # --- reference-only gather helpers (mirror the PyTorch helpers) ----------
    @staticmethod
    def _extract_anchor_data(anchor_data, anchor_idx):
        B, A, D, H, W = anchor_data.shape
        flat = jnp.transpose(anchor_data, (0, 1, 3, 4, 2)).reshape(-1, D)
        return flat[anchor_idx]

    def _extract_class_scores(self, all_scores, anchor_idx):
        B, C, H, W = all_scores.shape
        A = self.num_anchors
        s = jnp.transpose(all_scores, (0, 2, 3, 1)).reshape(B, 1, H, W, C)
        s = jnp.broadcast_to(s, (B, A, H, W, C)).reshape(B * A * H * W, C)
        return s[anchor_idx]

    # --- inference output slicing (kernel column layout -> NCHW outputs) ------
    def _split_outputs(self, out_rows, B, H, W):
        A, C = self.num_anchors, self.num_classes
        rows = out_rows.astype(jnp.float32)   # cast fuses into the transposes below
        conf = jnp.transpose(rows[:, :A].reshape(B, H, W, A), (0, 3, 1, 2))
        offsets = jnp.transpose(rows[:, A:5 * A].reshape(B, H, W, A, 4),
                                (0, 3, 4, 1, 2))
        cls = jnp.transpose(rows[:, 5 * A:5 * A + C].reshape(B, H, W, C),
                            (0, 3, 1, 2))
        return conf, offsets, cls

    # --- training-path gathers straight from the row-major kernel output ------
    def _gather_training(self, out_rows, pos_anchor_idx, neg_anchor_idx, B, H, W):
        A, C = self.num_anchors, self.num_classes
        HW = H * W

        def decomp(idx):
            # anchor_idx indexes a flattened (B, A, H, W) layout (PyTorch helpers).
            b = idx // (A * HW)
            rem = idx % (A * HW)
            a = rem // HW
            hw = rem % HW
            return b * HW + hw, a     # row in out_rows (B*H*W, .), anchor id

        rows_p, a_p = decomp(pos_anchor_idx)
        rows_n, a_n = decomp(neg_anchor_idx)

        conf_pos = out_rows[rows_p, a_p][:, None]
        conf_neg = out_rows[rows_n, a_n][:, None]
        conf = jnp.concatenate([conf_pos, conf_neg], axis=0).astype(jnp.float32)

        off_cols = A + 4 * a_p[:, None] + jnp.arange(4, dtype=a_p.dtype)[None, :]
        offsets = out_rows[rows_p[:, None], off_cols].astype(jnp.float32)

        class_scores = out_rows[rows_p][:, 5 * A:5 * A + C].astype(jnp.float32)
        return conf, offsets, class_scores

    # --- pure-JAX f32 reference (same permuted weights), for parity checks ----
    def reference(self, features):
        B, Cin, H, W = features.shape
        A = self.num_anchors
        x = jnp.transpose(features, (0, 2, 3, 1)).reshape(B * H * W, Cin)
        h = x @ self.w1_f32 + self.b1
        h = jnp.where(h > 0, h, 0.01 * h)
        o = h @ self.w2_f32 + self.b2
        col = jnp.arange(o.shape[-1])[None, :]
        is_conf = col < A
        is_off_xy = (col >= A) & (col < 5 * A) & (((col - A) % 4) < 2)
        o = jnp.where(is_conf | is_off_xy,
                      jax.nn.sigmoid(o) - jnp.where(is_off_xy, 0.5, 0.0), o)
        return self._split_outputs(o, B, H, W)

    def reference_training(self, features, pos_anchor_idx, neg_anchor_idx):
        conf, offs, cls = self.reference(features)
        B, A, H, W = conf.shape
        cls_t = self._extract_class_scores(cls, pos_anchor_idx)
        offs_t = self._extract_anchor_data(offs, pos_anchor_idx)
        conf5 = conf.reshape(B, A, 1, H, W)
        conf_p = self._extract_anchor_data(conf5, pos_anchor_idx)
        conf_n = self._extract_anchor_data(conf5, neg_anchor_idx)
        return jnp.concatenate([conf_p, conf_n], axis=0), offs_t, cls_t

    # --- forward ---------------------------------------------------------------
    def __call__(self, features, pos_anchor_idx=None, neg_anchor_idx=None,
                 *, channels_last=False):
        # features: (B, in_dim, H, W) NCHW (PyTorch convention) by default.
        # Pass channels_last=True with (B, H, W, in_dim) inputs to skip the transpose.
        if channels_last:
            B, H, W, Cin = features.shape
            x_rows = features.reshape(B * H * W, Cin).astype(jnp.bfloat16)
        else:
            B, Cin, H, W = features.shape
            # transpose + reshape + bf16 cast as one expression so XLA fuses one pass
            x_rows = jnp.transpose(features, (0, 2, 3, 1)) \
                        .reshape(B * H * W, Cin).astype(jnp.bfloat16)
        A = self.num_anchors

        out_rows = _run_pred_mlp(x_rows, self.w1, self.b1, self.w2, self.b2, A,
                                 out_dtype=self.out_dtype)

        if pos_anchor_idx is not None and neg_anchor_idx is not None:
            # Training path: gather directly from the row-major kernel output;
            # no NCHW back-transposes at all.
            return self._gather_training(out_rows, pos_anchor_idx, neg_anchor_idx, B, H, W)

        # Inference path: NCHW outputs required by the original module's contract.
        return self._split_outputs(out_rows, B, H, W)


if __name__ == "__main__":
    key = jax.random.PRNGKey(0)
    k_feat, k_params, k_idx = jax.random.split(key, 3)

    B, in_dim, H, W = 2, 64, 7, 7
    hidden_dim, A, C = 128, 9, 20

    net = PredictionNetworkPallas(in_dim, hidden_dim=hidden_dim,
                                  num_anchors=A, num_classes=C, key=k_params)
    features = jax.random.normal(k_feat, (B, in_dim, H, W), jnp.float32)

    forward = jax.jit(net.__call__, static_argnames=("channels_last",))

    # Inference path (N = B*H*W = 98 rows -> 2 grid steps with a ragged last block)
    conf, offs, cls = forward(features)
    jax.block_until_ready((conf, offs, cls))
    assert conf.shape == (B, A, H, W)
    assert offs.shape == (B, A, 4, H, W)
    assert cls.shape == (B, C, H, W)

    # Parity vs pure-JAX f32 reference (loose tolerance: bf16 MXU operands + bf16 output)
    ref_conf, ref_offs, ref_cls = net.reference(features)
    assert jnp.allclose(conf, ref_conf, atol=5e-2, rtol=5e-2)
    assert jnp.allclose(offs, ref_offs, atol=5e-2, rtol=5e-2)
    assert jnp.allclose(cls, ref_cls, atol=5e-2, rtol=5e-2)

    # Training path (direct row-major gathers around the same kernel output)
    M = 8
    total = B * A * H * W
    pos_idx = jax.random.randint(k_idx, (M,), 0, total)
    neg_idx = (pos_idx + 13) % total
    conf_t, offs_t, cls_t = forward(features, pos_idx, neg_idx)
    jax.block_until_ready((conf_t, offs_t, cls_t))
    assert conf_t.shape == (2 * M, 1)
    assert offs_t.shape == (M, 4)
    assert cls_t.shape == (M, C)

    ref_conf_t, ref_offs_t, ref_cls_t = net.reference_training(features, pos_idx, neg_idx)
    assert jnp.allclose(conf_t, ref_conf_t, atol=5e-2, rtol=5e-2)
    assert jnp.allclose(offs_t, ref_offs_t, atol=5e-2, rtol=5e-2)
    assert jnp.allclose(cls_t, ref_cls_t, atol=5e-2, rtol=5e-2)

    print("KERNEL_OK")
</pallas_src>

<mosaic_0001>
module attributes {stable_mosaic.version = 11 : i64} {
  func.func @_pred_mlp_kernel(%arg0: i32, %arg1: memref<64x64xbf16, #tpu.memory_space<vmem>>, %arg2: memref<64x128xbf16, #tpu.memory_space<vmem>>, %arg3: memref<1x128xf32, #tpu.memory_space<vmem>>, %arg4: memref<128x128xbf16, #tpu.memory_space<vmem>>, %arg5: memref<1x128xf32, #tpu.memory_space<vmem>>, %arg6: memref<64x128xbf16, #tpu.memory_space<vmem>>) attributes {dimension_semantics = [#tpu.dimension_semantics<parallel>], iteration_bounds = array<i64: 2>, scalar_prefetch = 0 : i64, scratch_operands = 0 : i64, tpu.core_type = #tpu.core_type<tc>, window_params = [{transform_indices = @transform_0, window_bounds = array<i64: 64, 64>}, {pipeline_mode = #tpu.pipeline_mode<synchronous>, transform_indices = @transform_1, window_bounds = array<i64: 64, 128>}, {pipeline_mode = #tpu.pipeline_mode<synchronous>, transform_indices = @transform_2, window_bounds = array<i64: 1, 128>}, {pipeline_mode = #tpu.pipeline_mode<synchronous>, transform_indices = @transform_3, window_bounds = array<i64: 128, 128>}, {pipeline_mode = #tpu.pipeline_mode<synchronous>, transform_indices = @transform_4, window_bounds = array<i64: 1, 128>}, {transform_indices = @transform_5, window_bounds = array<i64: 64, 128>}]} {
    %c0 = arith.constant 0 : index
    %c0_0 = arith.constant 0 : index
    %0 = vector.load %arg1[%c0, %c0_0] : memref<64x64xbf16, #tpu.memory_space<vmem>>, vector<64x64xbf16>
    %c0_1 = arith.constant 0 : index
    %c0_2 = arith.constant 0 : index
    %1 = vector.load %arg2[%c0_1, %c0_2] : memref<64x128xbf16, #tpu.memory_space<vmem>>, vector<64x128xbf16>
    %cst = arith.constant dense<0.000000e+00> : vector<64x128xf32>
    %2 = tpu.matmul %0, %1, %cst {dimension_numbers = #tpu.dot_dimension_numbers<[1], [0], [0], [1], [0, 0, 1, 1], [], []>} : vector<64x64xbf16>, vector<64x128xbf16>, vector<64x128xf32> -> vector<64x128xf32>
    %c0_3 = arith.constant 0 : index
    %c0_4 = arith.constant 0 : index
    %3 = vector.load %arg3[%c0_3, %c0_4] : memref<1x128xf32, #tpu.memory_space<vmem>>, vector<1x128xf32>
    %4 = vector.broadcast %3 : vector<1x128xf32> to vector<64x128xf32>
    %5 = arith.addf %2, %4 : vector<64x128xf32>
    %cst_5 = arith.constant 0.000000e+00 : f32
    %6 = vector.broadcast %cst_5 : f32 to vector<64x128xf32>
    %7 = arith.cmpf ogt, %5, %6 : vector<64x128xf32>
    %cst_6 = arith.constant 0.00999999977 : f32
    %8 = vector.broadcast %cst_6 : f32 to vector<64x128xf32>
    %9 = arith.mulf %8, %5 : vector<64x128xf32>
    %10 = arith.select %7, %5, %9 : vector<64x128xi1>, vector<64x128xf32>
    %11 = arith.truncf %10 : vector<64x128xf32> to vector<64x128xbf16>
    %c0_7 = arith.constant 0 : index
    %c0_8 = arith.constant 0 : index
    %12 = vector.load %arg4[%c0_7, %c0_8] : memref<128x128xbf16, #tpu.memory_space<vmem>>, vector<128x128xbf16>
    %cst_9 = arith.constant dense<0.000000e+00> : vector<64x128xf32>
    %13 = tpu.matmul %11, %12, %cst_9 {dimension_numbers = #tpu.dot_dimension_numbers<[1], [0], [0], [1], [0, 0, 1, 1], [], []>} : vector<64x128xbf16>, vector<128x128xbf16>, vector<64x128xf32> -> vector<64x128xf32>
    %c0_10 = arith.constant 0 : index
    %c0_11 = arith.constant 0 : index
    %14 = vector.load %arg5[%c0_10, %c0_11] : memref<1x128xf32, #tpu.memory_space<vmem>>, vector<1x128xf32>
    %15 = vector.broadcast %14 : vector<1x128xf32> to vector<64x128xf32>
    %16 = arith.addf %13, %15 : vector<64x128xf32>
    %17 = tpu.iota {dimensions = array<i32: 1>} : vector<1x128xi32>
    %c9_i32 = arith.constant 9 : i32
    %18 = vector.broadcast %c9_i32 : i32 to vector<1x128xi32>
    %19 = arith.cmpi slt, %17, %18 : vector<1x128xi32>
    %c9_i32_12 = arith.constant 9 : i32
    %20 = vector.broadcast %c9_i32_12 : i32 to vector<1x128xi32>
    %21 = arith.cmpi sge, %17, %20 : vector<1x128xi32>
    %c45_i32 = arith.constant 45 : i32
    %22 = vector.broadcast %c45_i32 : i32 to vector<1x128xi32>
    %23 = arith.cmpi slt, %17, %22 : vector<1x128xi32>
    %24 = arith.andi %21, %23 : vector<1x128xi1>
    %c9_i32_13 = arith.constant 9 : i32
    %25 = vector.broadcast %c9_i32_13 : i32 to vector<1x128xi32>
    %26 = arith.subi %17, %25 : vector<1x128xi32>
    %c4_i32 = arith.constant 4 : i32
    %c0_i32 = arith.constant 0 : i32
    %27 = arith.cmpi eq, %c4_i32, %c0_i32 : i32
    %c1_i32 = arith.constant 1 : i32
    %28 = arith.select %27, %c1_i32, %c4_i32 : i32
    %29 = vector.broadcast %28 : i32 to vector<1x128xi32>
    %30 = arith.remsi %26, %29 : vector<1x128xi32>
    %c0_i32_14 = arith.constant 0 : i32
    %31 = vector.broadcast %c0_i32_14 : i32 to vector<1x128xi32>
    %32 = arith.cmpi ne, %30, %31 : vector<1x128xi32>
    %c0_i32_15 = arith.constant 0 : i32
    %33 = vector.broadcast %c0_i32_15 : i32 to vector<1x128xi32>
    %34 = arith.cmpi slt, %30, %33 : vector<1x128xi32>
    %c0_i32_16 = arith.constant 0 : i32
    %35 = arith.cmpi slt, %28, %c0_i32_16 : i32
    %36 = vector.broadcast %35 : i1 to vector<1x128xi1>
    %37 = vector.broadcast %36 : vector<1x128xi1> to vector<1x128xi1>
    %38 = arith.xori %34, %37 : vector<1x128xi1>
    %39 = arith.andi %38, %32 : vector<1x128xi1>
    %40 = vector.broadcast %28 : i32 to vector<1x128xi32>
    %41 = arith.addi %30, %40 : vector<1x128xi32>
    %42 = arith.select %39, %41, %30 : vector<1x128xi1>, vector<1x128xi32>
    %c2_i32 = arith.constant 2 : i32
    %43 = vector.broadcast %c2_i32 : i32 to vector<1x128xi32>
    %44 = arith.cmpi slt, %42, %43 : vector<1x128xi32>
    %45 = arith.andi %24, %44 : vector<1x128xi1>
    %46 = arith.ori %19, %45 : vector<1x128xi1>
    %cst_17 = arith.constant 5.000000e-01 : f32
    %cst_18 = arith.constant 0.000000e+00 : f32
    %47 = vector.broadcast %cst_17 : f32 to vector<1x128xf32>
    %48 = vector.broadcast %cst_18 : f32 to vector<1x128xf32>
    %49 = arith.select %45, %47, %48 : vector<1x128xi1>, vector<1x128xf32>
    %cst_19 = arith.constant 0.000000e+00 : f32
    %50 = vector.broadcast %cst_19 : f32 to vector<64x128xf32>
    %51 = arith.subf %50, %16 : vector<64x128xf32>
    %52 = math.exp %51 : vector<64x128xf32>
    %cst_20 = arith.constant 1.000000e+00 : f32
    %53 = vector.broadcast %cst_20 : f32 to vector<64x128xf32>
    %54 = arith.addf %53, %52 : vector<64x128xf32>
    %55 = tpu.reciprocal %54 {approx = true} : vector<64x128xf32> -> vector<64x128xf32>
    %56 = vector.broadcast %49 : vector<1x128xf32> to vector<64x128xf32>
    %57 = arith.subf %55, %56 : vector<64x128xf32>
    %58 = vector.shape_cast %46 : vector<1x128xi1> to vector<1x128xi1>
    %59 = vector.broadcast %58 : vector<1x128xi1> to vector<64x128xi1>
    %60 = arith.select %59, %57, %16 : vector<64x128xi1>, vector<64x128xf32>
    %61 = arith.truncf %60 : vector<64x128xf32> to vector<64x128xbf16>
    %c0_21 = arith.constant 0 : index
    %c0_22 = arith.constant 0 : index
    %62 = vector.load %arg6[%c0_21, %c0_22] : memref<64x128xbf16, #tpu.memory_space<vmem>>, vector<64x128xbf16>
    tpu.vector_store %arg6[%c0_21, %c0_22], %61 {strides = array<i32>} : memref<64x128xbf16, #tpu.memory_space<vmem>>, vector<64x128xbf16>,
    return
  }
  func.func @transform_0(%arg0: i32) -> (i32, i32) {
    %c0_i32 = arith.constant 0 : i32
    %c0_i32_0 = arith.constant 0 : i32
    return %arg0, %c0_i32 : i32, i32
  }
  func.func @transform_1(%arg0: i32) -> (i32, i32) {
    %c0_i32 = arith.constant 0 : i32
    %c0_i32_0 = arith.constant 0 : i32
    %c0_i32_1 = arith.constant 0 : i32
    return %c0_i32, %c0_i32_0 : i32, i32
  }
  func.func @transform_2(%arg0: i32) -> (i32, i32) {
    %c0_i32 = arith.constant 0 : i32
    %c0_i32_0 = arith.constant 0 : i32
    %c0_i32_1 = arith.constant 0 : i32
    return %c0_i32, %c0_i32_0 : i32, i32
  }
  func.func @transform_3(%arg0: i32) -> (i32, i32) {
    %c0_i32 = arith.constant 0 : i32
    %c0_i32_0 = arith.constant 0 : i32
    %c0_i32_1 = arith.constant 0 : i32
    return %c0_i32, %c0_i32_0 : i32, i32
  }
  func.func @transform_4(%arg0: i32) -> (i32, i32) {
    %c0_i32 = arith.constant 0 : i32
    %c0_i32_0 = arith.constant 0 : i32
    %c0_i32_1 = arith.constant 0 : i32
    return %c0_i32, %c0_i32_0 : i32, i32
  }
  func.func @transform_5(%arg0: i32) -> (i32, i32) {
    %c0_i32 = arith.constant 0 : i32
    %c0_i32_0 = arith.constant 0 : i32
    return %arg0, %c0_i32 : i32, i32
  }
}

</mosaic_0001>

<llo_original>
// kernel: a_call__.1
$region0: #{a_call__.1}
  #allocation0 [shape = 'u32[]', space=smem, size = 0x4, offset = 0x4, fixed_abs, tag = 'smem constant byte address 0x4 - core index']
  #allocation1 [shape = 'u32[144,128]{1,0:T(1,128)}', space=vmem, size = 0x12000, scoped, tag = 'internal scratch']
  %s0 = inlined_call_operand.vmem [shape: bf16[98,64], index: 0, kind: input, shape index: {}]
  %s1 = inlined_call_operand.vmem [shape: bf16[64,128], index: 1, kind: input, shape index: {}]
  %s2 = inlined_call_operand.vmem [shape: f32[1,128], index: 2, kind: input, shape index: {}]
  %s3 = inlined_call_operand.vmem [shape: bf16[128,128], index: 3, kind: input, shape index: {}]
  %s4 = inlined_call_operand.vmem [shape: f32[1,128], index: 4, kind: input, shape index: {}]
  %s5 = inlined_call_operand.vmem [shape: bf16[98,128], index: 5, kind: output, shape index: {}]
  %s6 = sld [smem:[#allocation0]]
  $region97: #{a_call__.1} parent=0
    _
  %s8 = ssub.s32 1, %s6
  %s9 = scalar_select 0, %s8, %s6
  $region1: #{a_call__.1} parent=0
    #allocation2 [shape = 'u8[32768]{0}', space=vmem, size = 0x8000, scoped, tag = 'output window, operand 0']
    loop: start=0, step=1, limit=4
    $region2: #{a_call__.1} parent=1 // loop_pre_header
      _
    $region3: #{a_call__.1} parent=1 // loop_header
      %s11 = sphi 0, %s15
      %p12 = scmp.ge.s32.totalorder %s11, 4
      %s21 = sphi 0, %s23
      %s24 = sphi 0, %s21
      %s25 = sphi 0, %s24
      %s41 = sphi 0, %s25
      %s45 = sphi 0, %s45
      %s47 = sphi 0, %s45
      %s48 = sphi 0, %s47
      %s62 = sphi 0, %s48
      %s66 = sphi 0, %s66
      %s68 = sphi 0, %s66
      %s69 = sphi 0, %s68
      %s83 = sphi 0, %s69
      %s87 = sphi 0, %s87
      %s89 = sphi 0, %s87
      %s90 = sphi 0, %s89
      %s104 = sphi 0, %s90
      %s108 = sphi 0, %s108
      %s110 = sphi 0, %s108
      %s111 = sphi 0, %s110
      %s125 = sphi 0, %s111
      %s131 = sphi 0, %s133
      %s134 = sphi 0, %s131
      %s135 = sphi 0, %s134
      %s151 = sphi 0, %s135
    $region4: #{a_call__.1} parent=1 // loop_header_branch
      %14 = sbr.rel (%p12) target = $region8
    $region5: #{a_call__.1} parent=1 // loop_body
      %s16 = ssub.s32 %s11, 1
      %s17 = ssub.s32 %s11, 2
      %s18 = sadd.s32 %s11, 1
      %s19 = ssub.s32 %s11, %s18
      %p20 = scmp.eq.s32.totalorder %s19, 0
      %s22 = sadd.s32 %s21, 1
      %s23 = scalar_select %p20, %s21, %s22
      %p26 = pneg %p20
      %p27 = scmp.eq.s32.totalorder %s11, 1
      %p28 = por %p26, %p27
      %p29 = scmp.ne.s32.totalorder %s21, %s24
      %p30 = scmp.eq.s32.totalorder %s11, 0
      %p31 = por %p29, %p30
      %p32 = scmp.ne.s32.totalorder %s21, %s24
      %p33 = scmp.eq.s32.totalorder %s16, 1
      %p34 = por %p32, %p33
      %p35 = scmp.ne.s32.totalorder %s24, %s25
      %p36 = scmp.eq.s32.totalorder %s16, 0
      %p37 = por %p35, %p36
      %p38 = scmp.ne.s32.totalorder %s24, %s25
      %p39 = scmp.eq.s32.totalorder %s17, 1
      %p40 = por %p38, %p39
      %p42 = scmp.ne.s32.totalorder %s25, %s41
      %p43 = scmp.eq.s32.totalorder %s17, 0
      %p44 = por %p42, %p43
      %s46 = sadd.s32 %s45, 1
      %p49 = scmp.eq.s32.totalorder %s11, 1
      %p50 = scmp.ne.s32.totalorder %s45, %s47
      %p51 = scmp.eq.s32.totalorder %s11, 0
      %p52 = por %p50, %p51
      %p53 = scmp.ne.s32.totalorder %s45, %s47
      %p54 = scmp.eq.s32.totalorder %s16, 1
      %p55 = por %p53, %p54
      %p56 = scmp.ne.s32.totalorder %s47, %s48
      %p57 = scmp.eq.s32.totalorder %s16, 0
      %p58 = por %p56, %p57
      %p59 = scmp.ne.s32.totalorder %s47, %s48
      %p60 = scmp.eq.s32.totalorder %s17, 1
      %p61 = por %p59, %p60
      %p63 = scmp.ne.s32.totalorder %s48, %s62
      %p64 = scmp.eq.s32.totalorder %s17, 0
      %p65 = por %p63, %p64
      %s67 = sadd.s32 %s66, 1
      %p70 = scmp.eq.s32.totalorder %s11, 1
      %p71 = scmp.ne.s32.totalorder %s66, %s68
      %p72 = scmp.eq.s32.totalorder %s11, 0
      %p73 = por %p71, %p72
      %p74 = scmp.ne.s32.totalorder %s66, %s68
      %p75 = scmp.eq.s32.totalorder %s16, 1
      %p76 = por %p74, %p75
      %p77 = scmp.ne.s32.totalorder %s68, %s69
      %p78 = scmp.eq.s32.totalorder %s16, 0
      %p79 = por %p77, %p78
      %p80 = scmp.ne.s32.totalorder %s68, %s69
      %p81 = scmp.eq.s32.totalorder %s17, 1
      %p82 = por %p80, %p81
      %p84 = scmp.ne.s32.totalorder %s69, %s83
      %p85 = scmp.eq.s32.totalorder %s17, 0
      %p86 = por %p84, %p85
      %s88 = sadd.s32 %s87, 1
      %p91 = scmp.eq.s32.totalorder %s11, 1
      %p92 = scmp.ne.s32.totalorder %s87, %s89
      %p93 = scmp.eq.s32.totalorder %s11, 0
      %p94 = por %p92, %p93
      %p95 = scmp.ne.s32.totalorder %s87, %s89
      %p96 = scmp.eq.s32.totalorder %s16, 1
      %p97 = por %p95, %p96
      %p98 = scmp.ne.s32.totalorder %s89, %s90
      %p99 = scmp.eq.s32.totalorder %s16, 0
      %p100 = por %p98, %p99
      %p101 = scmp.ne.s32.totalorder %s89, %s90
      %p102 = scmp.eq.s32.totalorder %s17, 1
      %p103 = por %p101, %p102
      %p105 = scmp.ne.s32.totalorder %s90, %s104
      %p106 = scmp.eq.s32.totalorder %s17, 0
      %p107 = por %p105, %p106
      %s109 = sadd.s32 %s108, 1
      %p112 = scmp.eq.s32.totalorder %s11, 1
      %p113 = scmp.ne.s32.totalorder %s108, %s110
      %p114 = scmp.eq.s32.totalorder %s11, 0
      %p115 = por %p113, %p114
      %p116 = scmp.ne.s32.totalorder %s108, %s110
      %p117 = scmp.eq.s32.totalorder %s16, 1
      %p118 = por %p116, %p117
      %p119 = scmp.ne.s32.totalorder %s110, %s111
      %p120 = scmp.eq.s32.totalorder %s16, 0
      %p121 = por %p119, %p120
      %p122 = scmp.ne.s32.totalorder %s110, %s111
      %p123 = scmp.eq.s32.totalorder %s17, 1
      %p124 = por %p122, %p123
      %p126 = scmp.ne.s32.totalorder %s111, %s125
      %p127 = scmp.eq.s32.totalorder %s17, 0
      %p128 = por %p126, %p127
      %s129 = ssub.s32 %s11, %s18
      %p130 = scmp.eq.s32.totalorder %s129, 0
      %s132 = sadd.s32 %s131, 1
      %s133 = scalar_select %p130, %s131, %s132
      %p136 = pneg %p130
      %p137 = scmp.eq.s32.totalorder %s11, 1
      %p138 = por %p136, %p137
      %p139 = scmp.ne.s32.totalorder %s131, %s134
      %p140 = scmp.eq.s32.totalorder %s11, 0
      %p141 = por %p139, %p140
      %p142 = scmp.ne.s32.totalorder %s131, %s134
      %p143 = scmp.eq.s32.totalorder %s16, 1
      %p144 = por %p142, %p143
      %p145 = scmp.ne.s32.totalorder %s134, %s135
      %p146 = scmp.eq.s32.totalorder %s16, 0
      %p147 = por %p145, %p146
      %p148 = scmp.ne.s32.totalorder %s134, %s135
      %p149 = scmp.eq.s32.totalorder %s17, 1
      %p150 = por %p148, %p149
      %p152 = scmp.ne.s32.totalorder %s135, %s151
      %p153 = scmp.eq.s32.totalorder %s17, 0
      %p154 = por %p152, %p153
      %p155 = scmp.le.s32.totalorder 1, %s11
      %p156 = scmp.lt.s32.totalorder %s11, 3
      %p157 = pnand %p155, %p156
      %p158 = pneg %p157
      // Predicated region
      $region9: #{a_call__.1} parent=5 // pred_check
        _
      $region10: #{a_call__.1} parent=5 // pred_check_branch
        %160 = sbr.rel (%p157) target = $region12
      $region11: #{a_call__.1} parent=5 // pred_region
        %s161 = ssub.s32 %s11, 1
        // Predicated region
        $region13: #{a_call__.1} parent=11 // pred_check
          %p162 = pneg %p58
        $region14: #{a_call__.1} parent=11 // pred_check_branch
          %164 = sbr.rel (%p162) target = $region16
        $region15: #{a_call__.1} parent=11 // pred_region
          _
        $region16: #{a_call__.1} parent=11 // pred_fallthru
          _
        // Predicated region
        $region17: #{a_call__.1} parent=11 // pred_check
          %p165 = pneg %p79
        $region18: #{a_call__.1} parent=11 // pred_check_branch
          %167 = sbr.rel (%p165) target = $region20
        $region19: #{a_call__.1} parent=11 // pred_region
          _
        $region20: #{a_call__.1} parent=11 // pred_fallthru
          _
        // Predicated region
        $region21: #{a_call__.1} parent=11 // pred_check
          %p168 = pneg %p100
        $region22: #{a_call__.1} parent=11 // pred_check_branch
          %170 = sbr.rel (%p168) target = $region24
        $region23: #{a_call__.1} parent=11 // pred_region
          _
        $region24: #{a_call__.1} parent=11 // pred_fallthru
          _
        // Predicated region
        $region25: #{a_call__.1} parent=11 // pred_check
          %p171 = pneg %p121
        $region26: #{a_call__.1} parent=11 // pred_check_branch
          %173 = sbr.rel (%p171) target = $region28
        $region27: #{a_call__.1} parent=11 // pred_region
          _
        $region28: #{a_call__.1} parent=11 // pred_fallthru
          _
      $region12: #{a_call__.1} parent=5 // pred_fallthru
        _
      %p174 = scmp.lt.s32.totalorder %s11, 2
      // Predicated region
      $region29: #{a_call__.1} parent=5 // pred_check
        %p175 = pneg %p174
      $region30: #{a_call__.1} parent=5 // pred_check_branch
        %177 = sbr.rel (%p175) target = $region32
      $region31: #{a_call__.1} parent=5 // pred_region
        // Predicated region
        $region33: #{a_call__.1} parent=31 // pred_check
          %p178 = pneg %p31
        $region34: #{a_call__.1} parent=31 // pred_check_branch
          %180 = sbr.rel (%p178) target = $region36
        $region35: #{a_call__.1} parent=31 // pred_region
          %s181 = smul.u32 8, %s11
          %s182 = ssub.s32 13, %s181
          %p183 = scmp.lt.s32.totalorder %s182, 8
          %s184 = scalar_select %p183, %s182, 8
          %s185 = smul.u32 64, %s184
          %p186 = scmp.lt.s32.totalorder %s181, 12
          %s187 = scalar_select %p186, %s181, 12
          %s188 = smul.addr %s187, 4
          %s189 = scalar_lea.vmem %s0, %s188
          %s190 = smul.u32 8, %s11
          %s191 = ssub.s32 13, %s190
          %p192 = scmp.lt.s32.totalorder %s191, 8
          %s193 = scalar_select %p192, %s191, 8
          %s194 = smul.u32 64, %s193
        $region36: #{a_call__.1} parent=31 // pred_fallthru
          _
      $region32: #{a_call__.1} parent=5 // pred_fallthru
        _
      %p195 = scmp.le.s32.totalorder 1, %s11
      %p196 = scmp.lt.s32.totalorder %s11, 3
      %p197 = pnand %p195, %p196
      %p198 = pneg %p197
      // Predicated region
      $region37: #{a_call__.1} parent=5 // pred_check
        _
      $region38: #{a_call__.1} parent=5 // pred_check_branch
        %200 = sbr.rel (%p197) target = $region40
      $region39: #{a_call__.1} parent=5 // pred_region
        %s201 = ssub.s32 %s11, 1
        %s202 = smul.u32 8, %s16
        %s203 = ssub.s32 13, %s202
        %p204 = scmp.lt.s32.totalorder %s203, 8
        %s205 = scalar_select %p204, %s203, 8
        %s206 = smul.u32 64, %s205
        %p207 = scmp.lt.s32.totalorder %s202, 12
        %s208 = scalar_select %p207, %s202, 12
        %s209 = smul.addr %s208, 4
        %s210 = scalar_lea.vmem %s0, %s209
        %p211 = pneg %p37
        %p212 = pneg %p34
        %p213 = pneg %p58
        %p214 = pneg %p55
        %p215 = pneg %p79
        %p216 = pneg %p76
        %p217 = pneg %p100
        %p218 = pneg %p97
        %p219 = pneg %p121
        %p220 = pneg %p118
        %p221 = pneg %p147
        %p222 = pneg %p144
        %s223 = sand.u32 %s134, 1
        %s224 = sand.u32 %s134, 1
        %s225 = smul.addr %s224, 32
        %s226 = scalar_lea.vmem [#allocation2], %s225
        %s227 = smul.u32 8, %s16
        %s228 = ssub.s32 13, %s227
        %p229 = scmp.lt.s32.totalorder %s228, 8
        %s230 = scalar_select %p229, %s228, 8
        %s231 = smul.u32 64, %s230
        %p232 = scmp.lt.s32.totalorder %s227, 12
        %s233 = scalar_select %p232, %s227, 12
        %s234 = smul.addr %s233, 4
        %s235 = scalar_lea.vmem %s0, %s234
        %s236 = smul.u32 8, %s16
        %s237 = ssub.s32 13, %s236
        %p238 = scmp.lt.s32.totalorder %s237, 8
        %s239 = scalar_select %p238, %s237, 8
        %s240 = smul.u32 64, %s239
        %s241 = smul.u32 8, %s16
        %s242 = ssub.s32 13, %s241
        %p243 = scmp.lt.s32.totalorder %s242, 8
        %s244 = scalar_select %p243, %s242, 8
        %s245 = smul.u32 64, %s244
        %v247 = vld [vmem:[%s235] sm:$0xf]
        %v248 = vld [vmem:[%s235 + $0x4] sm:$0xf]
        %v249 = vld [vmem:[%s235 + $0x8] sm:$0xf]
        %v250 = vld [vmem:[%s235 + $0xc] sm:$0xf]
        %v251 = vld [vmem:[%s235 + $0x10] sm:$0xf]
        %v252 = vld [vmem:[%s235 + $0x14] sm:$0xf]
        %v253 = vld [vmem:[%s235 + $0x18] sm:$0xf]
        %v254 = vld [vmem:[%s235 + $0x1c] sm:$0xf]
        %v255 = vld [vmem:[%s1] sm:$0xf]
        %v256 = vld [vmem:[%s1 + $0x4] sm:$0xf]
        %v257 = vld [vmem:[%s1 + $0x8] sm:$0xf]
        %v258 = vld [vmem:[%s1 + $0xc] sm:$0xf]
        %v259 = vld [vmem:[%s1 + $0x10] sm:$0xf]
        %v260 = vld [vmem:[%s1 + $0x14] sm:$0xf]
        %v261 = vld [vmem:[%s1 + $0x18] sm:$0xf]
        %v262 = vld [vmem:[%s1 + $0x1c] sm:$0xf]
        %v263 = vld [vmem:[%s2] sm:$0x1]
        %v265 = vlaneseq
        %v266 = vshrl.u32 %v265, 7
        %v267 = vsub.s32 0, %v266
        %v268 = vrot.slane %v263, %v267
        %v278 = vunpack.c.l.b16 %v247
        %v279 = vunpack.c.l.b16 %v248
        %v280 = vunpack.c.l.b16 %v249
        %v281 = vunpack.c.l.b16 %v250
        %v282 = vunpack.c.l.b16 %v251
        %v283 = vunpack.c.l.b16 %v252
        %v284 = vunpack.c.l.b16 %v253
        %v285 = vunpack.c.l.b16 %v254
        %v286 = vpack.c.b16 %v279, %v278
        %v287 = vpack.c.b16 %v281, %v280
        %v288 = vpack.c.b16 %v283, %v282
        %v289 = vpack.c.b16 %v285, %v284
        %v298 = vunpack.c.l.b16 %v255
        %v299 = vunpack.c.l.b16 %v256
        %v300 = vunpack.c.l.b16 %v257
        %v301 = vunpack.c.l.b16 %v258
        %v302 = vunpack.c.l.b16 %v259
        %v303 = vunpack.c.l.b16 %v260
        %v304 = vunpack.c.l.b16 %v261
        %v305 = vunpack.c.l.b16 %v262
        %v306 = vpack.c.b16 %v299, %v298
        %v307 = vpack.c.b16 %v301, %v300
        %v308 = vpack.c.b16 %v303, %v302
        %v309 = vpack.c.b16 %v305, %v304
        %vm314 = vcmask 523264
        %v316 = vsel %vm314, %v286, 0
        %v319 = vsel %vm314, %v287, 0
        %v322 = vsel %vm314, %v288, 0
        %v325 = vsel %vm314, %v289, 0
        %327 = vmatprep.subr.bf16.mxu0 0
        %328 = vmatpush1.bf16.msra.mxu0 %v306
        %329 = vmatprep.subr.bf16.mxu0 0
        %330 = vmatpush1.bf16.msra.mxu0 %v307
        %331 = vmatprep.subr.bf16.mxu0 0
        %332 = vmatpush1.bf16.msra.mxu0 %v308
        %333 = vmatprep.subr.bf16.mxu0 0
        %334 = vmatpush1.bf16.msra.mxu0 %v309
        %335 = vmatprep.subr.bf16.mxu0 0
        %336 = vmatpush1.bf16.msra.mxu0 0
        %337 = vmatprep.subr.bf16.mxu0 0
        %338 = vmatpush1.bf16.msra.mxu0 0
        %339 = vmatprep.subr.bf16.mxu0 0
        %340 = vmatpush1.bf16.msra.mxu0 0
        %341 = vmatprep.subr.bf16.mxu0 0
        %342 = vmatpush1.bf16.msra.mxu0 0
        %343 = vmatprep.subr.bf16.mxu0 0
        %344 = vmatpush1.bf16.msra.mxu0 0
        %345 = vmatprep.subr.bf16.mxu0 0
        %346 = vmatpush1.bf16.msra.mxu0 0
        %347 = vmatprep.subr.bf16.mxu0 0
        %348 = vmatpush1.bf16.msra.mxu0 0
        %349 = vmatprep.subr.bf16.mxu0 0
        %350 = vmatpush1.bf16.msra.mxu0 0
        %351 = vmatprep.subr.bf16.mxu0 0
        %352 = vmatpush1.bf16.msra.mxu0 0
        %353 = vmatprep.subr.bf16.mxu0 0
        %354 = vmatpush1.bf16.msra.mxu0 0
        %355 = vmatprep.subr.bf16.mxu0 0
        %356 = vmatpush1.bf16.msra.mxu0 0
        %357 = vmatprep.subr.bf16.mxu0 0
        %358 = vmatpush1.bf16.msra.mxu0 0
        %359 = vmatprep.mubr.bf16.mxu0 0
        %360 = vmatmul.mubr.bf16.gmra.mrb[0].mxu0 %v316
        %v361 = vpop.f32.mrb[0].mxu0
        %v362 = vadd.f32 %v268, %v361
        %v363 = vpop.f32.mrb[0].mxu0
        %v364 = vpop.f32.mrb[0].mxu0
        %v365 = vadd.f32 %v268, %v364
        %v366 = vpop.f32.mrb[0].mxu0
        %367 = vmatprep.mubr.bf16.mxu0 0
        %368 = vmatmul.mubr.bf16.gmra.mrb[0].mxu0 %v319
        %v369 = vpop.f32.mrb[0].mxu0
        %v370 = vadd.f32 %v268, %v369
        %v371 = vpop.f32.mrb[0].mxu0
        %v372 = vpop.f32.mrb[0].mxu0
        %v373 = vadd.f32 %v268, %v372
        %v374 = vpop.f32.mrb[0].mxu0
        %375 = vmatprep.mubr.bf16.mxu0 0
        %376 = vmatmul.mubr.bf16.gmra.mrb[0].mxu0 %v322
        %v377 = vpop.f32.mrb[0].mxu0
        %v378 = vadd.f32 %v268, %v377
        %v379 = vpop.f32.mrb[0].mxu0
        %v380 = vpop.f32.mrb[0].mxu0
        %v381 = vadd.f32 %v268, %v380
        %v382 = vpop.f32.mrb[0].mxu0
        %383 = vmatprep.mubr.bf16.mxu0 0
        %384 = vmatmul.mubr.bf16.gmra.mrb[0].mxu0 %v325
        %v385 = vpop.f32.mrb[0].mxu0
        %v386 = vadd.f32 %v268, %v385
        %v387 = vpop.f32.mrb[0].mxu0
        %v388 = vpop.f32.mrb[0].mxu0
        %v389 = vadd.f32 %v268, %v388
        %v390 = vpop.f32.mrb[0].mxu0
        %391 = vdwg.mxu0
        %vm392 = vcmp.gt.f32.partialorder %v362, 0.0
        %vm393 = vcmp.gt.f32.partialorder %v365, 0.0
        %vm394 = vcmp.gt.f32.partialorder %v370, 0.0
        %vm395 = vcmp.gt.f32.partialorder %v373, 0.0
        %vm396 = vcmp.gt.f32.partialorder %v378, 0.0
        %vm397 = vcmp.gt.f32.partialorder %v381, 0.0
        %vm398 = vcmp.gt.f32.partialorder %v386, 0.0
        %vm399 = vcmp.gt.f32.partialorder %v389, 0.0
        %v400 = vmul.f32 %v362, 0.01
        %v401 = vmul.f32 %v365, 0.01
        %v402 = vmul.f32 %v370, 0.01
        %v403 = vmul.f32 %v373, 0.01
        %v404 = vmul.f32 %v378, 0.01
        %v405 = vmul.f32 %v381, 0.01
        %v406 = vmul.f32 %v386, 0.01
        %v407 = vmul.f32 %v389, 0.01
        %v408 = vsel %vm392, %v362, %v400
        %v409 = vsel %vm393, %v365, %v401
        %v410 = vsel %vm394, %v370, %v402
        %v411 = vsel %vm395, %v373, %v403
        %v412 = vsel %vm396, %v378, %v404
        %v413 = vsel %vm397, %v381, %v405
        %v414 = vsel %vm398, %v386, %v406
        %v415 = vsel %vm399, %v389, %v407
        %v416 = vpack.c.bf16 %v409, %v408
        %v417 = vpack.c.bf16 %v411, %v410
        %v418 = vpack.c.bf16 %v413, %v412
        %v419 = vpack.c.bf16 %v415, %v414
        %v420 = vld [vmem:[%s3] sm:$0xf]
        %v421 = vld [vmem:[%s3 + $0x4] sm:$0xf]
        %v422 = vld [vmem:[%s3 + $0x8] sm:$0xf]
        %v423 = vld [vmem:[%s3 + $0xc] sm:$0xf]
        %v424 = vld [vmem:[%s3 + $0x10] sm:$0xf]
        %v425 = vld [vmem:[%s3 + $0x14] sm:$0xf]
        %v426 = vld [vmem:[%s3 + $0x18] sm:$0xf]
        %v427 = vld [vmem:[%s3 + $0x1c] sm:$0xf]
        %v428 = vld [vmem:[%s3 + $0x20] sm:$0xf]
        %v429 = vld [vmem:[%s3 + $0x24] sm:$0xf]
        %v430 = vld [vmem:[%s3 + $0x28] sm:$0xf]
        %v431 = vld [vmem:[%s3 + $0x2c] sm:$0xf]
        %v432 = vld [vmem:[%s3 + $0x30] sm:$0xf]
        %v433 = vld [vmem:[%s3 + $0x34] sm:$0xf]
        %v434 = vld [vmem:[%s3 + $0x38] sm:$0xf]
        %v435 = vld [vmem:[%s3 + $0x3c] sm:$0xf]
        %v436 = vld [vmem:[%s4] sm:$0x1]
        %v438 = vlaneseq
        %v439 = vshrl.u32 %v438, 7
        %v440 = vsub.s32 0, %v439
        %v441 = vrot.slane %v436, %v440
        %v459 = vunpack.c.l.b16 %v420
        %v460 = vunpack.c.l.b16 %v421
        %v461 = vunpack.c.l.b16 %v422
        %v462 = vunpack.c.l.b16 %v423
        %v463 = vunpack.c.l.b16 %v424
        %v464 = vunpack.c.l.b16 %v425
        %v465 = vunpack.c.l.b16 %v426
        %v466 = vunpack.c.l.b16 %v427
        %v467 = vunpack.c.l.b16 %v428
        %v468 = vunpack.c.l.b16 %v429
        %v469 = vunpack.c.l.b16 %v430
        %v470 = vunpack.c.l.b16 %v431
        %v471 = vunpack.c.l.b16 %v432
        %v472 = vunpack.c.l.b16 %v433
        %v473 = vunpack.c.l.b16 %v434
        %v474 = vunpack.c.l.b16 %v435
        %v475 = vpack.c.b16 %v460, %v459
        %v476 = vpack.c.b16 %v462, %v461
        %v477 = vpack.c.b16 %v464, %v463
        %v478 = vpack.c.b16 %v466, %v465
        %v479 = vpack.c.b16 %v468, %v467
        %v480 = vpack.c.b16 %v470, %v469
        %v481 = vpack.c.b16 %v472, %v471
        %v482 = vpack.c.b16 %v474, %v473
        %491 = vmatprep.subr.bf16.mxu0 0
        %492 = vmatpush1.bf16.msra.mxu0 %v475
        %493 = vmatprep.subr.bf16.mxu0 0
        %494 = vmatpush1.bf16.msra.mxu0 %v476
        %495 = vmatprep.subr.bf16.mxu0 0
        %496 = vmatpush1.bf16.msra.mxu0 %v477
        %497 = vmatprep.subr.bf16.mxu0 0
        %498 = vmatpush1.bf16.msra.mxu0 %v478
        %499 = vmatprep.subr.bf16.mxu0 0
        %500 = vmatpush1.bf16.msra.mxu0 %v479
        %501 = vmatprep.subr.bf16.mxu0 0
        %502 = vmatpush1.bf16.msra.mxu0 %v480
        %503 = vmatprep.subr.bf16.mxu0 0
        %504 = vmatpush1.bf16.msra.mxu0 %v481
        %505 = vmatprep.subr.bf16.mxu0 0
        %506 = vmatpush1.bf16.msra.mxu0 %v482
        %507 = vmatprep.subr.bf16.mxu0 0
        %508 = vmatpush1.bf16.msra.mxu0 0
        %509 = vmatprep.subr.bf16.mxu0 0
        %510 = vmatpush1.bf16.msra.mxu0 0
        %511 = vmatprep.subr.bf16.mxu0 0
        %512 = vmatpush1.bf16.msra.mxu0 0
        %513 = vmatprep.subr.bf16.mxu0 0
        %514 = vmatpush1.bf16.msra.mxu0 0
        %515 = vmatprep.subr.bf16.mxu0 0
        %516 = vmatpush1.bf16.msra.mxu0 0
        %517 = vmatprep.subr.bf16.mxu0 0
        %518 = vmatpush1.bf16.msra.mxu0 0
        %519 = vmatprep.subr.bf16.mxu0 0
        %520 = vmatpush1.bf16.msra.mxu0 0
        %521 = vmatprep.subr.bf16.mxu0 0
        %522 = vmatpush1.bf16.msra.mxu0 0
        %523 = vmatprep.mubr.bf16.mxu0 0
        %524 = vmatmul.mubr.bf16.gmra.mrb[0].mxu0 %v416
        %v525 = vpop.f32.mrb[0].mxu0
        %v526 = vadd.f32 %v441, %v525
        %v527 = vpop.f32.mrb[0].mxu0
        %v528 = vpop.f32.mrb[0].mxu0
        %v529 = vadd.f32 %v441, %v528
        %v530 = vpop.f32.mrb[0].mxu0
        %531 = vmatprep.mubr.bf16.mxu0 0
        %532 = vmatmul.mubr.bf16.gmra.mrb[0].mxu0 %v417
        %v533 = vpop.f32.mrb[0].mxu0
        %v534 = vadd.f32 %v441, %v533
        %v535 = vpop.f32.mrb[0].mxu0
        %v536 = vpop.f32.mrb[0].mxu0
        %v537 = vadd.f32 %v441, %v536
        %v538 = vpop.f32.mrb[0].mxu0
        %539 = vmatprep.mubr.bf16.mxu0 0
        %540 = vmatmul.mubr.bf16.gmra.mrb[0].mxu0 %v418
        %v541 = vpop.f32.mrb[0].mxu0
        %v542 = vadd.f32 %v441, %v541
        %v543 = vpop.f32.mrb[0].mxu0
        %v544 = vpop.f32.mrb[0].mxu0
        %v545 = vadd.f32 %v441, %v544
        %v546 = vpop.f32.mrb[0].mxu0
        %547 = vmatprep.mubr.bf16.mxu0 0
        %548 = vmatmul.mubr.bf16.gmra.mrb[0].mxu0 %v419
        %v549 = vpop.f32.mrb[0].mxu0
        %v550 = vadd.f32 %v441, %v549
        %v551 = vpop.f32.mrb[0].mxu0
        %v552 = vpop.f32.mrb[0].mxu0
        %v553 = vadd.f32 %v441, %v552
        %v554 = vpop.f32.mrb[0].mxu0
        %555 = vdwg.mxu0
        %v556 = vlaneseq
        %v557 = vand.u32 %v556, 127
        %vm558 = vcmp.lt.s32.totalorder %v557, 9
        %vm559 = vcmp.ge.s32.totalorder %v557, 9
        %vm560 = vcmp.lt.s32.totalorder %v557, 45
        %vm561 = vmand %vm559, %vm560
        %v562 = vsub.s32 %v557, 9
        %vm563 = vcmp.lt.s32.totalorder %v562, 0
        %v564 = vsub.s32 0, %v562
        %v565 = vsel %vm563, %v564, %v562
        %v566 = vshrl.u32 %v565, 2
        %v567 = vand.u32 %v565, 3
        %v568 = vsub.s32 0, %v567
        %v569 = vsel %vm563, %v568, %v567
        %vm570 = vcmp.ne.s32.totalorder %v569, 0
        %vm571 = vcmp.lt.s32.totalorder %v569, 0
        %vm572 = vmand %vm571, %vm570
        %v573 = vadd.s32 %v569, 4
        %v574 = vsel %vm572, %v573, %v569
        %vm575 = vcmp.lt.s32.totalorder %v574, 2
        %vm576 = vmand %vm561, %vm575
        %vm577 = vmor %vm558, %vm576
        %v578 = vsel %vm576, 0.5, 0.0
        %v579 = vsub.f32 0.0, %v526
        %v580 = vsub.f32 0.0, %v529
        %v581 = vsub.f32 0.0, %v534
        %v582 = vsub.f32 0.0, %v537
        %v583 = vsub.f32 0.0, %v542
        %v584 = vsub.f32 0.0, %v545
        %v585 = vsub.f32 0.0, %v550
        %v586 = vsub.f32 0.0, %v553
        %v587 = vmul.f32 %v579, 1.442695
        %v588 = vpow.pop %v587
        %v589 = vmul.f32 %v580, 1.442695
        %v590 = vpow.pop %v589
        %v591 = vmul.f32 %v581, 1.442695
        %v592 = vpow.pop %v591
        %v593 = vmul.f32 %v582, 1.442695
        %v594 = vpow.pop %v593
        %v595 = vmul.f32 %v583, 1.442695
        %v596 = vpow.pop %v595
        %v597 = vmul.f32 %v584, 1.442695
        %v598 = vpow.pop %v597
        %v599 = vmul.f32 %v585, 1.442695
        %v600 = vpow.pop %v599
        %v601 = vmul.f32 %v586, 1.442695
        %v602 = vpow.pop %v601
        %v603 = vadd.f32 %v588, 1.0
        %v604 = vadd.f32 %v590, 1.0
        %v605 = vadd.f32 %v592, 1.0
        %v606 = vadd.f32 %v594, 1.0
        %v607 = vadd.f32 %v596, 1.0
        %v608 = vadd.f32 %v598, 1.0
        %v609 = vadd.f32 %v600, 1.0
        %v610 = vadd.f32 %v602, 1.0
        %v611 = vrcp.pop %v603
        %v612 = vrcp.pop %v604
        %v613 = vrcp.pop %v605
        %v614 = vrcp.pop %v606
        %v615 = vrcp.pop %v607
        %v616 = vrcp.pop %v608
        %v617 = vrcp.pop %v609
        %v618 = vrcp.pop %v610
        %v619 = vsub.f32 %v611, %v578
        %v620 = vsub.f32 %v612, %v578
        %v621 = vsub.f32 %v613, %v578
        %v622 = vsub.f32 %v614, %v578
        %v623 = vsub.f32 %v615, %v578
        %v624 = vsub.f32 %v616, %v578
        %v625 = vsub.f32 %v617, %v578
        %v626 = vsub.f32 %v618, %v578
        %v627 = vsel %vm577, 1, 0
        %vm628 = vcmp.eq.s32.totalorder %v627, 1
        %v629 = vsel %vm628, %v619, %v526
        %v630 = vsel %vm628, %v620, %v529
        %v631 = vsel %vm628, %v621, %v534
        %v632 = vsel %vm628, %v622, %v537
        %v633 = vsel %vm628, %v623, %v542
        %v634 = vsel %vm628, %v624, %v545
        %v635 = vsel %vm628, %v625, %v550
        %v636 = vsel %vm628, %v626, %v553
        %v637 = vpack.c.bf16 %v630, %v629
        %v638 = vpack.c.bf16 %v632, %v631
        %v639 = vpack.c.bf16 %v634, %v633
        %v640 = vpack.c.bf16 %v636, %v635
        %v645 = vunpack.c.l.b16 %v637
        %v646 = vunpack.c.h.b16 %v637
        %v647 = vunpack.c.l.b16 %v638
        %v648 = vunpack.c.h.b16 %v638
        %v649 = vunpack.c.l.b16 %v639
        %v650 = vunpack.c.h.b16 %v639
        %v651 = vunpack.c.l.b16 %v640
        %v652 = vunpack.c.h.b16 %v640
        %v653 = vpack.c.b16 %v645, %v645
        %v654 = vpack.c.b16 %v646, %v646
        %v655 = vpack.c.b16 %v647, %v647
        %v656 = vpack.c.b16 %v648, %v648
        %v657 = vpack.c.b16 %v649, %v649
        %v658 = vpack.c.b16 %v650, %v650
        %v659 = vpack.c.b16 %v651, %v651
        %v660 = vpack.c.b16 %v652, %v652
        %669 = vst [vmem:[%s226] sm:$0xf] %v653
        %670 = vst [vmem:[%s226 + $0x4] sm:$0xf] %v654
        %671 = vst [vmem:[%s226 + $0x8] sm:$0xf] %v655
        %672 = vst [vmem:[%s226 + $0xc] sm:$0xf] %v656
        %673 = vst [vmem:[%s226 + $0x10] sm:$0xf] %v657
        %674 = vst [vmem:[%s226 + $0x14] sm:$0xf] %v658
        %675 = vst [vmem:[%s226 + $0x18] sm:$0xf] %v659
        %676 = vst [vmem:[%s226 + $0x1c] sm:$0xf] %v660
        %s677 = sand.u32 %s134, 1
        %s678 = sand.u32 %s134, 1
        %s679 = smul.addr %s678, 32
        %s680 = scalar_lea.vmem [#allocation2], %s679
        // Predicated region
        $region41: #{a_call__.1} parent=39 // pred_check
          %p681 = pneg %p144
        $region42: #{a_call__.1} parent=39 // pred_check_branch
          %683 = sbr.rel (%p681) target = $region44
        $region43: #{a_call__.1} parent=39 // pred_region
          %s684 = smul.u32 8, %s16
          %s685 = ssub.s32 13, %s684
          %p686 = scmp.lt.s32.totalorder %s685, 8
          %s687 = scalar_select %p686, %s685, 8
          %s688 = smul.u32 64, %s687
          %p689 = scmp.ne.s32.totalorder 0, %s688
          %s690 = smul.addr %s684, 4
          %s691 = scalar_lea.vmem %s5, %s690
          // Predicated region
          $region45: #{a_call__.1} parent=43 // pred_check
            %p692 = pneg %p689
          $region46: #{a_call__.1} parent=43 // pred_check_branch
            %694 = sbr.rel (%p692) target = $region48
          $region47: #{a_call__.1} parent=43 // pred_region
            // Predicated region
            $region49: #{a_call__.1} parent=47 // pred_check
              _
            $region50: #{a_call__.1} parent=47 // pred_check_branch
              %696 = sbr.rel target = $region52
            $region51: #{a_call__.1} parent=47 // pred_region
              // Predicated region
              $region71: #{a_call__.1} parent=51 // pred_check
                _
              $region72: #{a_call__.1} parent=51 // pred_check_branch
                %759 = sbr.rel (0) target = $region74
              $region73: #{a_call__.1} parent=51 // pred_region
                %s761 = sshrl.u32 %s687, 3
                // While loop
                $region75: #{a_call__.1} parent=73 // loop_pre_header
                  _
                $region76: #{a_call__.1} parent=73 // loop_header
                  %s763 = sphi 0, %s765
                  %p764 = scmp.ge.s32.totalorder %s763, %s761
                  %s768 = sphi 0, %s789
                  %s769 = sphi %s680, %s792
                  %s770 = sphi %s691, %s793
                $region77: #{a_call__.1} parent=73 // loop_header_branch
                  %767 = sbr.rel (%p764) target = $region81
                $region78: #{a_call__.1} parent=73 // loop_body
                  %v771 = vld [vmem:[%s769] sm:$0xf]
                  %772 = vst [vmem:[%s770] sm:$0xf] %v771
                  %v773 = vld [vmem:[%s769 + $0x4] sm:$0xf]
                  %774 = vst [vmem:[%s770 + $0x4] sm:$0xf] %v773
                  %v775 = vld [vmem:[%s769 + $0x8] sm:$0xf]
                  %776 = vst [vmem:[%s770 + $0x8] sm:$0xf] %v775
                  %v777 = vld [vmem:[%s769 + $0xc] sm:$0xf]
                  %778 = vst [vmem:[%s770 + $0xc] sm:$0xf] %v777
                  %v779 = vld [vmem:[%s769 + $0x10] sm:$0xf]
                  %780 = vst [vmem:[%s770 + $0x10] sm:$0xf] %v779
                  %v781 = vld [vmem:[%s769 + $0x14] sm:$0xf]
                  %782 = vst [vmem:[%s770 + $0x14] sm:$0xf] %v781
                  %v783 = vld [vmem:[%s769 + $0x18] sm:$0xf]
                  %784 = vst [vmem:[%s770 + $0x18] sm:$0xf] %v783
                  %v785 = vld [vmem:[%s769 + $0x1c] sm:$0xf]
                  %786 = vst [vmem:[%s770 + $0x1c] sm:$0xf] %v785
                  %s787 = sadd.s32 1, %s768
                  %p788 = scmp.ge.s32.totalorder %s787, %s761
                  %s789 = scalar_select %p788, 0, %s787
                  %s790 = smul.u32 %s789, 32
                  %s791 = smul.u32 %s789, 32
                  %s792 = scalar_lea.vmem %s680, %s790 [#allocation2]
                  %s793 = scalar_lea.vmem %s691, %s791
                $region79: #{a_call__.1} parent=73 // loop_footer
                  %s765 = sadd.s32 %s763, 1
                $region80: #{a_call__.1} parent=73 // loop_footer_branch
                  %762 = sbr.rel target = $region76
                $region81: #{a_call__.1} parent=73 // loop_exit
                  _
                %s794 = sshrl.u32 %s687, 3
                %s795 = sand.u32 %s687, 7
                %s796 = smul.u32 %s794, 8
                %s797 = smul.u32 4, %s796
                %s798 = scalar_lea.vmem %s680, %s797 [#allocation2]
                %s799 = smul.u32 4, %s796
                %s800 = scalar_lea.vmem %s691, %s799
                // While loop
                $region82: #{a_call__.1} parent=73 // loop_pre_header
                  _
                $region83: #{a_call__.1} parent=73 // loop_header
                  %s802 = sphi 0, %s804
                  %p803 = scmp.ge.s32.totalorder %s802, %s795
                  %s807 = sphi 0, %s814
                  %s808 = sphi %s798, %s817
                  %s809 = sphi %s800, %s818
                $region84: #{a_call__.1} parent=73 // loop_header_branch
                  %806 = sbr.rel (%p803) target = $region88
                $region85: #{a_call__.1} parent=73 // loop_body
                  %v810 = vld [vmem:[%s808] sm:$0xf]
                  %811 = vst [vmem:[%s809] sm:$0xf] %v810
                  %s812 = sadd.s32 1, %s807
                  %p813 = scmp.ge.s32.totalorder %s812, %s795
                  %s814 = scalar_select %p813, 0, %s812
                  %s815 = smul.u32 %s814, 4
                  %s816 = smul.u32 %s814, 4
                  %s817 = scalar_lea.vmem %s798, %s815 [#allocation2]
                  %s818 = scalar_lea.vmem %s800, %s816
                $region86: #{a_call__.1} parent=73 // loop_footer
                  %s804 = sadd.s32 %s802, 1
                $region87: #{a_call__.1} parent=73 // loop_footer_branch
                  %801 = sbr.rel target = $region83
                $region88: #{a_call__.1} parent=73 // loop_exit
                  _
              $region74: #{a_call__.1} parent=51 // pred_fallthru
                _
            $region52: #{a_call__.1} parent=47 // pred_fallthru
              _
            // Predicated region
            $region53: #{a_call__.1} parent=47 // pred_check
              _
            $region54: #{a_call__.1} parent=47 // pred_check_branch
              %698 = sbr.rel (0) target = $region56
            $region55: #{a_call__.1} parent=47 // pred_region
              %s700 = sshrl.u32 %s687, 3
              // While loop
              $region57: #{a_call__.1} parent=55 // loop_pre_header
                _
              $region58: #{a_call__.1} parent=55 // loop_header
                %s702 = sphi 0, %s704
                %p703 = scmp.ge.s32.totalorder %s702, %s700
                %s707 = sphi 0, %s728
                %s708 = sphi %s680, %s731
                %s709 = sphi %s691, %s732
              $region59: #{a_call__.1} parent=55 // loop_header_branch
                %706 = sbr.rel (%p703) target = $region63
              $region60: #{a_call__.1} parent=55 // loop_body
                %v710 = vld [vmem:[%s708] sm:$0xf]
                %711 = vst [vmem:[%s709] sm:$0xf] %v710
                %v712 = vld [vmem:[%s708 + $0x4] sm:$0xf]
                %713 = vst [vmem:[%s709 + $0x4] sm:$0xf] %v712
                %v714 = vld [vmem:[%s708 + $0x8] sm:$0xf]
                %715 = vst [vmem:[%s709 + $0x8] sm:$0xf] %v714
                %v716 = vld [vmem:[%s708 + $0xc] sm:$0xf]
                %717 = vst [vmem:[%s709 + $0xc] sm:$0xf] %v716
                %v718 = vld [vmem:[%s708 + $0x10] sm:$0xf]
                %719 = vst [vmem:[%s709 + $0x10] sm:$0xf] %v718
                %v720 = vld [vmem:[%s708 + $0x14] sm:$0xf]
                %721 = vst [vmem:[%s709 + $0x14] sm:$0xf] %v720
                %v722 = vld [vmem:[%s708 + $0x18] sm:$0xf]
                %723 = vst [vmem:[%s709 + $0x18] sm:$0xf] %v722
                %v724 = vld [vmem:[%s708 + $0x1c] sm:$0xf]
                %725 = vst [vmem:[%s709 + $0x1c] sm:$0xf] %v724
                %s726 = sadd.s32 1, %s707
                %p727 = scmp.ge.s32.totalorder %s726, %s700
                %s728 = scalar_select %p727, 0, %s726
                %s729 = smul.u32 %s728, 32
                %s730 = smul.u32 %s728, 32
                %s731 = scalar_lea.vmem %s680, %s729 [#allocation2]
                %s732 = scalar_lea.vmem %s691, %s730
              $region61: #{a_call__.1} parent=55 // loop_footer
                %s704 = sadd.s32 %s702, 1
              $region62: #{a_call__.1} parent=55 // loop_footer_branch
                %701 = sbr.rel target = $region58
              $region63: #{a_call__.1} parent=55 // loop_exit
                _
              %s733 = sshrl.u32 %s687, 3
              %s734 = sand.u32 %s687, 7
              %s735 = smul.u32 %s733, 8
              %s736 = smul.u32 4, %s735
              %s737 = scalar_lea.vmem %s680, %s736 [#allocation2]
              %s738 = smul.u32 4, %s735
              %s739 = scalar_lea.vmem %s691, %s738
              // While loop
              $region64: #{a_call__.1} parent=55 // loop_pre_header
                _
              $region65: #{a_call__.1} parent=55 // loop_header
                %s741 = sphi 0, %s743
                %p742 = scmp.ge.s32.totalorder %s741, %s734
                %s746 = sphi 0, %s753
                %s747 = sphi %s737, %s756
                %s748 = sphi %s739, %s757
              $region66: #{a_call__.1} parent=55 // loop_header_branch
                %745 = sbr.rel (%p742) target = $region70
              $region67: #{a_call__.1} parent=55 // loop_body
                %v749 = vld [vmem:[%s747] sm:$0xf]
                %750 = vst [vmem:[%s748] sm:$0xf] %v749
                %s751 = sadd.s32 1, %s746
                %p752 = scmp.ge.s32.totalorder %s751, %s734
                %s753 = scalar_select %p752, 0, %s751
                %s754 = smul.u32 %s753, 4
                %s755 = smul.u32 %s753, 4
                %s756 = scalar_lea.vmem %s737, %s754 [#allocation2]
                %s757 = scalar_lea.vmem %s739, %s755
              $region68: #{a_call__.1} parent=55 // loop_footer
                %s743 = sadd.s32 %s741, 1
              $region69: #{a_call__.1} parent=55 // loop_footer_branch
                %740 = sbr.rel target = $region65
              $region70: #{a_call__.1} parent=55 // loop_exit
                _
            $region56: #{a_call__.1} parent=47 // pred_fallthru
              _
          $region48: #{a_call__.1} parent=43 // pred_fallthru
            _
          %819 = vnop
        $region44: #{a_call__.1} parent=39 // pred_fallthru
          _
      $region40: #{a_call__.1} parent=5 // pred_fallthru
        _
      %p820 = scmp.le.s32.totalorder 2, %s11
      // Predicated region
      $region89: #{a_call__.1} parent=5 // pred_check
        %p821 = pneg %p820
      $region90: #{a_call__.1} parent=5 // pred_check_branch
        %823 = sbr.rel (%p821) target = $region92
      $region91: #{a_call__.1} parent=5 // pred_region
        %s824 = ssub.s32 %s11, 2
        // Predicated region
        $region93: #{a_call__.1} parent=91 // pred_check
          %p825 = pneg %p150
        $region94: #{a_call__.1} parent=91 // pred_check_branch
          %827 = sbr.rel (%p825) target = $region96
        $region95: #{a_call__.1} parent=91 // pred_region
          %s828 = sand.u32 %s135, 1
          %s829 = sand.u32 %s135, 1
          %s830 = smul.addr %s829, 32
          %s831 = scalar_lea.vmem [#allocation2], %s830
        $region96: #{a_call__.1} parent=91 // pred_fallthru
          _
      $region92: #{a_call__.1} parent=5 // pred_fallthru
        _
    $region6: #{a_call__.1} parent=1 // loop_footer
      %s15 = sadd.s32 1, %s11
    $region7: #{a_call__.1} parent=1 // loop_footer_branch
      %10 = sbr.rel target = $region3
    $region8: #{a_call__.1} parent=1 // loop_exit
      _

</llo_original>
